<compile_context>
chip_gen: v7x
topology: tpu7x:2x2x1
jax: 0.10.0
libtpu: 0.0.40
codegen_flags: <defaults>
</compile_context>

<pallas_src>
import functools

import jax
import jax.numpy as jnp
from jax import lax
from jax.experimental import pallas as pl
from jax.experimental.pallas import tpu as pltpu


# ----------------------------------------------------------------------------
# Kernel
# ----------------------------------------------------------------------------
def _erc_loss_kernel(y_ref, t_ref, alpha_ref, out_ref, *,
                     batch_size, tile_b, tiles_per_split, n_classes,
                     from_logits, want_cce, want_dice, want_focal,
                     gamma, epsilon):
    split = pl.program_id(0)     # "parallel": one partial-sum slab per TensorCore (v7x)
    step = pl.program_id(1)      # "arbitrary": batch tiles within this slab

    @pl.when(step == 0)
    def _init():
        out_ref[...] = jnp.zeros_like(out_ref)

    eps = jnp.float32(epsilon)
    x = y_ref[...].astype(jnp.float32)     # (C, tile_b): classes on sublanes, batch on lanes
    t = t_ref[...].astype(jnp.float32)     # zero-padded beyond the true batch

    if from_logits:
        m = jnp.max(x, axis=0, keepdims=True)          # (1, tile_b) 8-sublane reduction
        z = x - m
        e = jnp.exp(z)
        den = jnp.sum(e, axis=0, keepdims=True)        # (1, tile_b)
        inv = 1.0 / den                                # exact per-column reciprocal
        p = e * inv                                    # softmax: 1 divide per column, not per element
    else:
        p = x

    pt = (p * t) if (want_dice or want_focal) else None   # reused by dice TP and focal prob

    head = []
    if want_cce:
        if from_logits:
            # sum_c -t*log_softmax = (m + log(den)) * sum_c(t) - sum_c(t*x); no logp tensor.
            tsum = jnp.sum(t, axis=0, keepdims=True)
            tx = jnp.sum(t * x, axis=0, keepdims=True)
            head.append((m + jnp.log(den)) * tsum - tx)
        else:
            # probability-input CCE (unreachable from the public wrappers; kept for completeness)
            head.append(-jnp.sum(t * jnp.log(jnp.maximum(x, eps)), axis=0, keepdims=True))

    if want_focal:
        prob = jnp.sum(pt, axis=0, keepdims=True)                  # p of the true class
        safe = jnp.clip(prob, eps, jnp.float32(1.0 - epsilon))
        one_m = 1.0 - safe
        g = float(gamma)
        if g == 2.0:                    # default: two VPU multiplies instead of EUP pow
            w = one_m * one_m
        elif g == 1.0:
            w = one_m
        elif g == 0.0:
            w = jnp.ones_like(one_m)
        else:
            w = jnp.power(one_m, jnp.float32(g))
        w = w * (-jnp.log(safe))
        # alpha[argmax(t)] == sum_c(alpha_c * t_c) for one-hot targets.
        # TODO(synk): soft / label-smoothed targets would need the original argmax-based gather.
        a_row = jnp.sum(alpha_ref[...].astype(jnp.float32) * t, axis=0, keepdims=True)
        head.append(a_row * w)

    row = 0
    if head:
        # merge the narrow per-lane partials into a single accumulator RMW
        h = head[0] if len(head) == 1 else jnp.concatenate(head, axis=0)
        row = len(head)
        out_ref[0:row, :] += h

    if want_dice:
        if from_logits:
            # Padded batch columns (zero logits) have p = 1/C != 0: mask the SumP contribution.
            # Only the trailing tile can contain them; the mask is a handful of lane ops per step.
            col0 = (split * tiles_per_split + step) * tile_b
            cols = col0 + lax.broadcasted_iota(jnp.int32, (1, tile_b), 1)
            p_sum = p * (cols < batch_size).astype(jnp.float32)
        else:
            p_sum = p       # zero-padded probability inputs already contribute nothing
        out_ref[row:row + n_classes, :] += pt                           # per-class TP partials
        out_ref[row + n_classes:row + 2 * n_classes, :] += p_sum + t    # SumP + SumT == 2TP+FP+FN


# ----------------------------------------------------------------------------
# Planning / wrappers
# ----------------------------------------------------------------------------
def _round_up(x, m):
    return ((x + m - 1) // m) * m


def _num_tensorcores():
    """Best-effort TensorCore count (v7x: 2, v5e/v6e: 1)."""
    try:
        info = pltpu.get_tpu_info()
        for attr in ("num_tensorcores", "tensorcore_count", "num_cores",
                     "cores_per_chip", "core_count"):
            v = getattr(info, attr, None)
            if isinstance(v, int) and 0 < v <= 8:
                return int(v)
    except Exception:
        pass
    try:
        kind = jax.devices()[0].device_kind.lower()
        if "v7" in kind or "7x" in kind:
            return 2
    except Exception:
        pass
    return 1


def _plan(batch, n_classes, tile_b=None, n_splits=None):
    """Generation-aware tile plan for the lane-dense (C, B) layout."""
    try:
        vmem_bytes = int(getattr(pltpu.get_tpu_info(), "vmem_capacity_bytes",
                                 64 * 1024 * 1024))
    except Exception:
        vmem_bytes = 64 * 1024 * 1024      # v7x floor
    c8 = _round_up(max(n_classes, 1), 8)                 # sublane-padded class rows per block
    b128 = _round_up(max(batch, 1), 128)                 # batch rides on lanes
    acc_rows8 = _round_up(2 + 2 * n_classes, 8)
    if tile_b is None:
        # per-lane VMEM: 2 inputs x 2 pipeline buffers x c8 rows + ~2x the accumulator slab (f32)
        per_lane_bytes = (2 * 2 * c8 + 2 * acc_rows8) * 4
        budget = max(vmem_bytes // 4, 1 << 20)           # headroom; v7x has only 64 MiB per TC
        tile_b = budget // per_lane_bytes
        tile_b = max(128, min(1 << 16, (tile_b // 128) * 128))
    tile_b = max(128, min(_round_up(int(tile_b), 128), b128))
    n_tiles = -(-b128 // tile_b)
    if n_splits is None:
        n_splits = min(_num_tensorcores(), n_tiles)      # v5e/v6e: 1 TC -> no slab split
    n_splits = max(1, min(int(n_splits), n_tiles))
    tiles_per_split = -(-n_tiles // n_splits)
    padded_b = n_splits * tiles_per_split * tile_b
    vmem_limit = int(min(vmem_bytes * 3 // 4, 96 * 1024 * 1024))
    return tile_b, n_splits, tiles_per_split, padded_b, vmem_limit


def _transpose_pad(x, padded_b):
    """(B, C) -> lane-dense (C, padded_b), zero padding the batch (lane) axis."""
    xt = jnp.transpose(x)
    b = xt.shape[1]
    if padded_b != b:
        xt = jnp.pad(xt, ((0, 0), (0, padded_b - b)))
    return xt


def _erc_loss_partials(y_pred, y_true, alpha=None, *, from_logits, want_cce, want_dice,
                       want_focal, gamma, epsilon, tile_b=None, n_splits=None):
    """Single fused pass over (B, C). Returns dict of reduced partial sums."""
    b, c = y_pred.shape
    tile_b, n_splits, tiles_per_split, padded_b, vmem_limit = _plan(b, c, tile_b, n_splits)

    yp = _transpose_pad(y_pred, padded_b)          # (C, padded_b)
    yt = _transpose_pad(y_true, padded_b)
    if alpha is None:
        alpha = jnp.ones((c,), jnp.float32)
    alpha_col = jnp.asarray(alpha, jnp.float32).reshape(c, 1)

    n_head = int(want_cce) + int(want_focal)
    n_rows = n_head + (2 * c if want_dice else 0)

    kernel = functools.partial(
        _erc_loss_kernel,
        batch_size=int(b), tile_b=int(tile_b), tiles_per_split=int(tiles_per_split),
        n_classes=int(c), from_logits=bool(from_logits), want_cce=bool(want_cce),
        want_dice=bool(want_dice), want_focal=bool(want_focal),
        gamma=float(gamma), epsilon=float(epsilon))

    in_map = lambda s, i: (0, s * tiles_per_split + i)
    raw = pl.pallas_call(
        kernel,
        out_shape=jax.ShapeDtypeStruct((n_splits, n_rows, tile_b), jnp.float32),
        grid=(n_splits, tiles_per_split),
        in_specs=[pl.BlockSpec((c, tile_b), in_map),
                  pl.BlockSpec((c, tile_b), in_map),
                  pl.BlockSpec((c, 1), lambda s, i: (0, 0))],
        out_specs=pl.BlockSpec((None, n_rows, tile_b), lambda s, i: (s, 0, 0)),
        compiler_params=pltpu.CompilerParams(
            dimension_semantics=("parallel", "arbitrary"),
            vmem_limit_bytes=vmem_limit),
    )(yp, yt, alpha_col)

    acc = jnp.sum(raw, axis=0)                     # (n_rows, tile_b): combine per-core slabs
    out = {}
    row = 0
    if want_cce:
        out["cce_sum"] = jnp.sum(acc[row]); row += 1
    if want_focal:
        out["focal_sum"] = jnp.sum(acc[row]); row += 1
    if want_dice:
        out["tp"] = jnp.sum(acc[row:row + c], axis=-1)            # (C,)
        out["denom"] = jnp.sum(acc[row + c:row + 2 * c], axis=-1)  # (C,)
    return out


def erc_losses_fused(y_pred_logits, y_true, alpha, *, gamma=2.0, epsilon=1e-8,
                     reduction="mean", tile_b=None, n_splits=None):
    """One pass over (B, C) logits + targets -> (cce, dice, focal). Softmax computed in-kernel."""
    b = y_pred_logits.shape[0]
    acc = _erc_loss_partials(y_pred_logits, y_true, alpha, from_logits=True,
                             want_cce=True, want_dice=True, want_focal=True,
                             gamma=gamma, epsilon=epsilon, tile_b=tile_b, n_splits=n_splits)
    cce = acc["cce_sum"] / jnp.float32(b)
    dice = 1.0 - jnp.mean(2.0 * acc["tp"] / (acc["denom"] + jnp.float32(epsilon)))
    focal = acc["focal_sum"] / jnp.float32(b) if reduction == "mean" else acc["focal_sum"]
    return cce, dice, focal


def categorical_cross_entropy_loss(y_pred_logits, y_true, **plan_kw):
    b = y_pred_logits.shape[0]
    acc = _erc_loss_partials(y_pred_logits, y_true, from_logits=True,
                             want_cce=True, want_dice=False, want_focal=False,
                             gamma=2.0, epsilon=1e-8, **plan_kw)
    return acc["cce_sum"] / jnp.float32(b)


def dice_coefficient_loss(y_pred_probs, y_true, *, epsilon=1e-8, **plan_kw):
    acc = _erc_loss_partials(y_pred_probs, y_true, from_logits=False,
                             want_cce=False, want_dice=True, want_focal=False,
                             gamma=2.0, epsilon=epsilon, **plan_kw)
    return 1.0 - jnp.mean(2.0 * acc["tp"] / (acc["denom"] + jnp.float32(epsilon)))


def focal_multiclass_log_loss(y_pred_probs, y_true, alpha, *, gamma=2.0, epsilon=1e-8,
                              reduction="mean", **plan_kw):
    b = y_pred_probs.shape[0]
    acc = _erc_loss_partials(y_pred_probs, y_true, alpha, from_logits=False,
                             want_cce=False, want_dice=False, want_focal=True,
                             gamma=gamma, epsilon=epsilon, **plan_kw)
    return acc["focal_sum"] / jnp.float32(b) if reduction == "mean" else acc["focal_sum"]


# ----------------------------------------------------------------------------
# Pure-JAX references (validation)
# ----------------------------------------------------------------------------
def _ref_cce(logits, t):
    logp = jax.nn.log_softmax(logits, axis=-1)
    return jnp.mean(-jnp.sum(t * logp, axis=-1))


def _ref_dice(p, t, eps):
    tp = jnp.sum(p * t, axis=0)
    fp = jnp.sum(p * (1 - t), axis=0)
    fn = jnp.sum((1 - p) * t, axis=0)
    dice = 2 * tp / (2 * tp + fp + fn + eps)
    return 1 - jnp.mean(dice)


def _ref_focal(p, t, alpha, gamma, eps):
    probs = jnp.sum(p * t, axis=1)
    safe = jnp.clip(probs, eps, 1.0 - eps)
    a = alpha[jnp.argmax(t, axis=1)]
    return jnp.mean(a * (1.0 - safe) ** gamma * (-jnp.log(safe)))


# ----------------------------------------------------------------------------
# Main
# ----------------------------------------------------------------------------
if __name__ == "__main__":
    C = 7               # number of emotion classes
    eps = 1e-8
    gamma = 2.0

    def make_inputs(key, b):
        k1, k2 = jax.random.split(key)
        logits = jax.random.normal(k1, (b, C), dtype=jnp.float32)
        labels = jax.random.randint(k2, (b,), 0, C)
        return logits, jax.nn.one_hot(labels, C, dtype=jnp.float32)

    alpha = jnp.asarray([0.1 * (i + 1) for i in range(C)], dtype=jnp.float32)

    # 1) Small batch, auto tile plan (single tile, split count from TensorCore count).
    logits_s, y_true_s = make_inputs(jax.random.PRNGKey(0), 20)
    probs_s = jax.nn.softmax(logits_s, axis=-1)
    res_small = erc_losses_fused(logits_s, y_true_s, alpha, gamma=gamma, epsilon=eps)

    # 2) Larger batch forced onto a small-tile, 2-way-split grid: exercises batch padding,
    #    the dice lane mask, a fully-padded trailing tile and the partial-sum slab split.
    logits_l, y_true_l = make_inputs(jax.random.PRNGKey(1), 300)
    probs_l = jax.nn.softmax(logits_l, axis=-1)
    res_large = erc_losses_fused(logits_l, y_true_l, alpha, gamma=gamma, epsilon=eps,
                                 tile_b=128, n_splits=2)

    # 3) Per-loss wrappers mirroring the PyTorch module signatures.
    cce_i = categorical_cross_entropy_loss(logits_s, y_true_s)
    dice_i = dice_coefficient_loss(probs_s, y_true_s, epsilon=eps)
    focal_i = focal_multiclass_log_loss(probs_s, y_true_s, alpha, gamma=gamma, epsilon=eps,
                                        reduction="mean")

    jax.block_until_ready((res_small, res_large, cce_i, dice_i, focal_i))

    def check(got, want, name):
        assert jnp.allclose(got, want, atol=1e-5, rtol=1e-5), (name, float(got), float(want))

    check(res_small[0], _ref_cce(logits_s, y_true_s), "cce_small")
    check(res_small[1], _ref_dice(probs_s, y_true_s, eps), "dice_small")
    check(res_small[2], _ref_focal(probs_s, y_true_s, alpha, gamma, eps), "focal_small")
    check(res_large[0], _ref_cce(logits_l, y_true_l), "cce_large")
    check(res_large[1], _ref_dice(probs_l, y_true_l, eps), "dice_large")
    check(res_large[2], _ref_focal(probs_l, y_true_l, alpha, gamma, eps), "focal_large")
    check(cce_i, _ref_cce(logits_s, y_true_s), "cce_wrapper")
    check(dice_i, _ref_dice(probs_s, y_true_s, eps), "dice_wrapper")
    check(focal_i, _ref_focal(probs_s, y_true_s, alpha, gamma, eps), "focal_wrapper")

    print("KERNEL_OK")
</pallas_src>

<mosaic_0001>
module attributes {stable_mosaic.version = 11 : i64} {
  func.func @_erc_loss_kernel(%arg0: i32, %arg1: i32, %arg2: memref<7x128xf32, #tpu.memory_space<vmem>>, %arg3: memref<7x128xf32, #tpu.memory_space<vmem>>, %arg4: memref<7x1xf32, #tpu.memory_space<vmem>>, %arg5: memref<1x16x128xf32, #tpu.memory_space<vmem>>) attributes {dimension_semantics = [#tpu.dimension_semantics<parallel>, #tpu.dimension_semantics<arbitrary>], iteration_bounds = array<i64: 1, 1>, scalar_prefetch = 0 : i64, scratch_operands = 0 : i64, tpu.core_type = #tpu.core_type<tc>, window_params = [{transform_indices = @transform_0, window_bounds = array<i64: 7, 128>}, {transform_indices = @transform_1, window_bounds = array<i64: 7, 128>}, {pipeline_mode = #tpu.pipeline_mode<synchronous>, transform_indices = @transform_2, window_bounds = array<i64: 7, 1>}, {transform_indices = @transform_3, window_bounds = array<i64: 1, 16, 128>}]} {
    %c0_i32 = arith.constant 0 : i32
    %0 = arith.cmpi eq, %arg1, %c0_i32 : i32
    %1 = arith.extui %0 : i1 to i32
    %c0_i32_0 = arith.constant 0 : i32
    %2 = arith.cmpi ne, %1, %c0_i32_0 : i32
    scf.if %2 {
      %cst_32 = arith.constant 0.000000e+00 : f32
      %77 = vector.broadcast %cst_32 : f32 to vector<16x128xf32>
      %c0_33 = arith.constant 0 : index
      %c0_34 = arith.constant 0 : index
      %c0_35 = arith.constant 0 : index
      %78 = vector.load %arg5[%c0_33, %c0_34, %c0_35] : memref<1x16x128xf32, #tpu.memory_space<vmem>>, vector<1x16x128xf32>
      %79 = vector.shape_cast %78 : vector<1x16x128xf32> to vector<16x128xf32>
      %80 = vector.shape_cast %77 : vector<16x128xf32> to vector<1x16x128xf32>
      tpu.vector_store %arg5[%c0_33, %c0_34, %c0_35], %80 {strides = array<i32>} : memref<1x16x128xf32, #tpu.memory_space<vmem>>, vector<1x16x128xf32>,
    } else {
    }
    %c0 = arith.constant 0 : index
    %c0_1 = arith.constant 0 : index
    %3 = vector.load %arg2[%c0, %c0_1] : memref<7x128xf32, #tpu.memory_space<vmem>>, vector<7x128xf32>
    %c0_2 = arith.constant 0 : index
    %c0_3 = arith.constant 0 : index
    %4 = vector.load %arg3[%c0_2, %c0_3] : memref<7x128xf32, #tpu.memory_space<vmem>>, vector<7x128xf32>
    %cst = arith.constant dense<0xFF800000> : vector<128xf32>
    %5 = vector.multi_reduction <maximumf>, %3, %cst [0] : vector<7x128xf32> to vector<128xf32>
    %6 = vector.shape_cast %5 : vector<128xf32> to vector<1x128xf32>
    %7 = vector.broadcast %6 : vector<1x128xf32> to vector<7x128xf32>
    %8 = arith.subf %3, %7 : vector<7x128xf32>
    %9 = math.exp %8 : vector<7x128xf32>
    %cst_4 = arith.constant dense<0.000000e+00> : vector<128xf32>
    %10 = vector.multi_reduction <add>, %9, %cst_4 [0] : vector<7x128xf32> to vector<128xf32>
    %11 = vector.shape_cast %10 : vector<128xf32> to vector<1x128xf32>
    %cst_5 = arith.constant 1.000000e+00 : f32
    %12 = vector.broadcast %cst_5 : f32 to vector<1x128xf32>
    %13 = arith.divf %12, %11 : vector<1x128xf32>
    %14 = vector.broadcast %13 : vector<1x128xf32> to vector<7x128xf32>
    %15 = arith.mulf %9, %14 : vector<7x128xf32>
    %16 = arith.mulf %15, %4 : vector<7x128xf32>
    %cst_6 = arith.constant dense<0.000000e+00> : vector<128xf32>
    %17 = vector.multi_reduction <add>, %4, %cst_6 [0] : vector<7x128xf32> to vector<128xf32>
    %18 = vector.shape_cast %17 : vector<128xf32> to vector<1x128xf32>
    %19 = arith.mulf %4, %3 : vector<7x128xf32>
    %cst_7 = arith.constant dense<0.000000e+00> : vector<128xf32>
    %20 = vector.multi_reduction <add>, %19, %cst_7 [0] : vector<7x128xf32> to vector<128xf32>
    %21 = vector.shape_cast %20 : vector<128xf32> to vector<1x128xf32>
    %22 = math.log %11 : vector<1x128xf32>
    %23 = arith.addf %6, %22 : vector<1x128xf32>
    %24 = arith.mulf %23, %18 : vector<1x128xf32>
    %25 = arith.subf %24, %21 : vector<1x128xf32>
    %cst_8 = arith.constant dense<0.000000e+00> : vector<128xf32>
    %26 = vector.multi_reduction <add>, %16, %cst_8 [0] : vector<7x128xf32> to vector<128xf32>
    %27 = vector.shape_cast %26 : vector<128xf32> to vector<1x128xf32>
    %cst_9 = arith.constant 9.99999993E-9 : f32
    %cst_10 = arith.constant 1.000000e+00 : f32
    %28 = vector.broadcast %cst_9 : f32 to vector<1x128xf32>
    %29 = arith.maximumf %28, %27 : vector<1x128xf32>
    %30 = vector.broadcast %cst_10 : f32 to vector<1x128xf32>
    %31 = arith.minimumf %30, %29 : vector<1x128xf32>
    %cst_11 = arith.constant 1.000000e+00 : f32
    %32 = vector.broadcast %cst_11 : f32 to vector<1x128xf32>
    %33 = arith.subf %32, %31 : vector<1x128xf32>
    %34 = arith.mulf %33, %33 : vector<1x128xf32>
    %35 = math.log %31 : vector<1x128xf32>
    %cst_12 = arith.constant 0.000000e+00 : f32
    %36 = vector.broadcast %cst_12 : f32 to vector<1x128xf32>
    %37 = arith.subf %36, %35 : vector<1x128xf32>
    %38 = arith.mulf %34, %37 : vector<1x128xf32>
    %c0_13 = arith.constant 0 : index
    %c0_14 = arith.constant 0 : index
    %39 = vector.load %arg4[%c0_13, %c0_14] : memref<7x1xf32, #tpu.memory_space<vmem>>, vector<7x1xf32>
    %40 = vector.broadcast %39 : vector<7x1xf32> to vector<7x128xf32>
    %41 = arith.mulf %40, %4 : vector<7x128xf32>
    %cst_15 = arith.constant dense<0.000000e+00> : vector<128xf32>
    %42 = vector.multi_reduction <add>, %41, %cst_15 [0] : vector<7x128xf32> to vector<128xf32>
    %43 = vector.shape_cast %42 : vector<128xf32> to vector<1x128xf32>
    %44 = arith.mulf %43, %38 : vector<1x128xf32>
    %45 = tpu.concatenate %25, %44 in 0 : vector<1x128xf32>, vector<1x128xf32> -> vector<2x128xf32>
    %c0_16 = arith.constant 0 : index
    %c0_17 = arith.constant 0 : index
    %c0_18 = arith.constant 0 : index
    %46 = vector.load %arg5[%c0_16, %c0_17, %c0_18] : memref<1x16x128xf32, #tpu.memory_space<vmem>>, vector<1x2x128xf32>
    %47 = vector.shape_cast %46 : vector<1x2x128xf32> to vector<2x128xf32>
    %48 = arith.addf %47, %45 : vector<2x128xf32>
    %c0_19 = arith.constant 0 : index
    %c0_20 = arith.constant 0 : index
    %c0_21 = arith.constant 0 : index
    %49 = vector.load %arg5[%c0_19, %c0_20, %c0_21] : memref<1x16x128xf32, #tpu.memory_space<vmem>>, vector<1x2x128xf32>
    %50 = vector.shape_cast %49 : vector<1x2x128xf32> to vector<2x128xf32>
    %51 = vector.shape_cast %48 : vector<2x128xf32> to vector<1x2x128xf32>
    tpu.vector_store %arg5[%c0_19, %c0_20, %c0_21], %51 {strides = array<i32>} : memref<1x16x128xf32, #tpu.memory_space<vmem>>, vector<1x2x128xf32>,
    %c1_i32 = arith.constant 1 : i32
    %52 = arith.muli %arg0, %c1_i32 : i32
    %53 = arith.addi %52, %arg1 : i32
    %c128_i32 = arith.constant 128 : i32
    %54 = arith.muli %53, %c128_i32 : i32
    %55 = tpu.iota {dimensions = array<i32: 1>} : vector<1x128xi32>
    %56 = vector.broadcast %54 : i32 to vector<1x128xi32>
    %57 = arith.addi %56, %55 : vector<1x128xi32>
    %c20_i32 = arith.constant 20 : i32
    %58 = vector.broadcast %c20_i32 : i32 to vector<1x128xi32>
    %59 = arith.cmpi slt, %57, %58 : vector<1x128xi32>
    %60 = arith.extui %59 : vector<1x128xi1> to vector<1x128xi32>
    %61 = arith.sitofp %60 : vector<1x128xi32> to vector<1x128xf32>
    %62 = vector.broadcast %61 : vector<1x128xf32> to vector<7x128xf32>
    %63 = arith.mulf %15, %62 : vector<7x128xf32>
    %c0_22 = arith.constant 0 : index
    %c2 = arith.constant 2 : index
    %c0_23 = arith.constant 0 : index
    %64 = vector.load %arg5[%c0_22, %c2, %c0_23] : memref<1x16x128xf32, #tpu.memory_space<vmem>>, vector<1x7x128xf32>
    %65 = vector.shape_cast %64 : vector<1x7x128xf32> to vector<7x128xf32>
    %66 = arith.addf %65, %16 : vector<7x128xf32>
    %c0_24 = arith.constant 0 : index
    %c2_25 = arith.constant 2 : index
    %c0_26 = arith.constant 0 : index
    %67 = vector.load %arg5[%c0_24, %c2_25, %c0_26] : memref<1x16x128xf32, #tpu.memory_space<vmem>>, vector<1x7x128xf32>
    %68 = vector.shape_cast %67 : vector<1x7x128xf32> to vector<7x128xf32>
    %69 = vector.shape_cast %66 : vector<7x128xf32> to vector<1x7x128xf32>
    tpu.vector_store %arg5[%c0_24, %c2_25, %c0_26], %69 {strides = array<i32>} : memref<1x16x128xf32, #tpu.memory_space<vmem>>, vector<1x7x128xf32>,
    %c0_27 = arith.constant 0 : index
    %c9 = arith.constant 9 : index
    %c0_28 = arith.constant 0 : index
    %70 = vector.load %arg5[%c0_27, %c9, %c0_28] : memref<1x16x128xf32, #tpu.memory_space<vmem>>, vector<1x7x128xf32>
    %71 = vector.shape_cast %70 : vector<1x7x128xf32> to vector<7x128xf32>
    %72 = arith.addf %63, %4 : vector<7x128xf32>
    %73 = arith.addf %71, %72 : vector<7x128xf32>
    %c0_29 = arith.constant 0 : index
    %c9_30 = arith.constant 9 : index
    %c0_31 = arith.constant 0 : index
    %74 = vector.load %arg5[%c0_29, %c9_30, %c0_31] : memref<1x16x128xf32, #tpu.memory_space<vmem>>, vector<1x7x128xf32>
    %75 = vector.shape_cast %74 : vector<1x7x128xf32> to vector<7x128xf32>
    %76 = vector.shape_cast %73 : vector<7x128xf32> to vector<1x7x128xf32>
    tpu.vector_store %arg5[%c0_29, %c9_30, %c0_31], %76 {strides = array<i32>} : memref<1x16x128xf32, #tpu.memory_space<vmem>>, vector<1x7x128xf32>,
    return
  }
  func.func @transform_0(%arg0: i32, %arg1: i32) -> (i32, i32) {
    %c1_i32 = arith.constant 1 : i32
    %0 = arith.muli %arg0, %c1_i32 : i32
    %1 = arith.addi %0, %arg1 : i32
    %c0_i32 = arith.constant 0 : i32
    %c0_i32_0 = arith.constant 0 : i32
    return %c0_i32, %1 : i32, i32
  }
  func.func @transform_1(%arg0: i32, %arg1: i32) -> (i32, i32) {
    %c1_i32 = arith.constant 1 : i32
    %0 = arith.muli %arg0, %c1_i32 : i32
    %1 = arith.addi %0, %arg1 : i32
    %c0_i32 = arith.constant 0 : i32
    %c0_i32_0 = arith.constant 0 : i32
    return %c0_i32, %1 : i32, i32
  }
  func.func @transform_2(%arg0: i32, %arg1: i32) -> (i32, i32) {
    %c0_i32 = arith.constant 0 : i32
    %c0_i32_0 = arith.constant 0 : i32
    %c0_i32_1 = arith.constant 0 : i32
    return %c0_i32, %c0_i32_0 : i32, i32
  }
  func.func @transform_3(%arg0: i32, %arg1: i32) -> (i32, i32, i32) {
    %c0_i32 = arith.constant 0 : i32
    %c0_i32_0 = arith.constant 0 : i32
    %c0_i32_1 = arith.constant 0 : i32
    return %arg0, %c0_i32, %c0_i32_0 : i32, i32, i32
  }
}

</mosaic_0001>

<llo_original>
// kernel: tpu_custom_call.1
$region0: #{tpu_custom_call.1}
  #allocation0 [shape = 'u32[]', space=smem, size = 0x4, offset = 0x4, fixed_abs, tag = 'smem constant byte address 0x4 - core index']
  #allocation1 [shape = 'u32[144,128]{1,0:T(1,128)}', space=vmem, size = 0x12000, scoped, tag = 'internal scratch']
  %s0 = inlined_call_operand.vmem [shape: f32[7,128], index: 0, kind: input, shape index: {}]
  %s1 = inlined_call_operand.hbm [shape: f32[7,128], index: 1, kind: input, shape index: {}]
  %s2 = inlined_call_operand.vmem [shape: f32[7,1], index: 2, kind: input, shape index: {}]
  %s3 = inlined_call_operand.hbm [shape: f32[1,16,128], index: 3, kind: output, shape index: {}]
  %s4 = sld [smem:[#allocation0]]
  $region30: #{tpu_custom_call.1} parent=0
    _
  %s6 = ssub.s32 1, %s4
  %s7 = scalar_select 0, %s6, %s4
  $region1: #{tpu_custom_call.1} parent=0
    #allocation2 [shape = 'u8[4096]{0}', space=vmem, size = 0x1000, scoped, tag = 'input window, operand 1, single buffered']
    #allocation3 [shape = 's32[1]{0}', space=sflag, size = 0x4, scoped, tag = 'scoped memory for tpu_custom_call.1']
    #allocation4 [shape = 's32[1]{0}', space=sflag, size = 0x4, scoped, tag = 'scoped memory for tpu_custom_call.1']
    #allocation5 [shape = 'u8[8192]{0}', space=vmem, size = 0x2000, scoped, tag = 'output window, operand 0, single buffered']
    %8 = vsyncpa [#allocation3], 0
    %9 = vsyncpa [#allocation4], 0
    // Predicated region
    $region2: #{tpu_custom_call.1} parent=1 // pred_check
      _
    $region3: #{tpu_custom_call.1} parent=1 // pred_check_branch
      %11 = sbr.rel (0) target = $region5
    $region4: #{tpu_custom_call.1} parent=1 // pred_region
      %s12 = sadd.s32 0, 0
      %p13 = scmp.lt.s32.totalorder %s12, 0
      %s14 = scalar_select %p13, %s12, 0
      %s15 = smul.addr %s14, 8
      %s16 = scalar_lea.vmem %s0, %s15
      %s17 = sadd.s32 0, 0
    $region5: #{tpu_custom_call.1} parent=1 // pred_fallthru
      _
    // Predicated region
    $region6: #{tpu_custom_call.1} parent=1 // pred_check
      _
    $region7: #{tpu_custom_call.1} parent=1 // pred_check_branch
      %19 = sbr.rel (0) target = $region9
    $region8: #{tpu_custom_call.1} parent=1 // pred_region
      %s20 = sadd.s32 0, 0
      %s22 = ssub.s32 128, 128
      %23 = vsyncadd [#allocation3], %s22
      %s24 = smul.addr %s20, 128
      %s25 = scalar_lea.hbm %s1, %s24
      %s27 = sshll.u32 [#allocation2], 4
      %s28 = int_to_ptr.vmem [resolvable:$true] %s27
      %30 = dma.hbm_to_vmem [thread:$0]  %s25, 128, %s28, [#allocation3]
    $region9: #{tpu_custom_call.1} parent=1 // pred_fallthru
      _
    // Predicated region
    $region10: #{tpu_custom_call.1} parent=1 // pred_check
      _
    $region11: #{tpu_custom_call.1} parent=1 // pred_check_branch
      %32 = sbr.rel (0) target = $region13
    $region12: #{tpu_custom_call.1} parent=1 // pred_region
      _
    $region13: #{tpu_custom_call.1} parent=1 // pred_fallthru
      _
    // Predicated region
    $region14: #{tpu_custom_call.1} parent=1 // pred_check
      _
    $region15: #{tpu_custom_call.1} parent=1 // pred_check_branch
      %34 = sbr.rel (0) target = $region17
    $region16: #{tpu_custom_call.1} parent=1 // pred_region
      %35 = dma.done [#allocation3], 128
    $region17: #{tpu_custom_call.1} parent=1 // pred_fallthru
      _
    %s36 = sadd.s32 0, 0
    %p37 = scmp.lt.s32.totalorder %s36, 0
    %s38 = scalar_select %p37, %s36, 0
    %s39 = smul.addr %s38, 8
    %s40 = scalar_lea.vmem %s0, %s39
    %s41 = sadd.s32 0, 0
    %p42 = scmp.lt.s32.totalorder %s41, 0
    %s43 = scalar_select %p42, %s41, 0
    %s44 = smul.addr %s43, 8
    %s45 = scalar_lea.vmem %s0, %s44
    %s46 = sadd.s32 0, 0
    %s47 = sadd.s32 0, 0
    %p48 = scmp.eq.s32.totalorder 0, 0
    // Predicated region
    $region18: #{tpu_custom_call.1} parent=1 // pred_check
      %p49 = pneg %p48
    $region19: #{tpu_custom_call.1} parent=1 // pred_check_branch
      %51 = sbr.rel (%p49) target = $region21
    $region20: #{tpu_custom_call.1} parent=1 // pred_region
      %52 = vst [vmem:[#allocation5] sm:$0xff] 0.0
      %53 = vst [vmem:[#allocation5 + $0x8] sm:$0xff] 0.0
    $region21: #{tpu_custom_call.1} parent=1 // pred_fallthru
      _
    %v54 = vld [vmem:[%s45] sm:$0x7f]
    %v55 = vld [vmem:[#allocation2] sm:$0x7f]
    %vm56 = vcmask 1046528
    %v57 = vsel %vm56, %v54, -inf
    %v58 = vrot.slane %v57, 4
    %v59 = vmax.f32 %v57, %v58
    %v60 = vrot.slane %v59, 2
    %v61 = vmax.f32 %v59, %v60
    %v62 = vrot.slane %v61, 1
    %v63 = vmax.f32 %v61, %v62
    %v64 = vsub.f32 %v54, %v63
    %v65 = vmul.f32 %v64, 1.442695
    %v66 = vpow.pop %v65
    %v67 = vsel %vm56, %v66, 0.0
    %v68 = vrot.slane %v67, 4
    %v69 = vadd.f32 %v67, %v68
    %v70 = vrot.slane %v69, 2
    %v71 = vadd.f32 %v69, %v70
    %v72 = vrot.slane %v71, 1
    %v73 = vadd.f32 %v71, %v72
    %v74 = vrcp.pop %v73
    %v75 = vmul.f32 1.0, %v74
    %v76 = vmul.f32 %v66, %v75
    %v77 = vmul.f32 %v76, %v55
    %v78 = vsel %vm56, %v55, 0.0
    %v79 = vrot.slane %v78, 4
    %v80 = vadd.f32 %v78, %v79
    %v81 = vrot.slane %v80, 2
    %v82 = vadd.f32 %v80, %v81
    %v83 = vrot.slane %v82, 1
    %v84 = vadd.f32 %v82, %v83
    %v85 = vmul.f32 %v55, %v54
    %v86 = vsel %vm56, %v85, 0.0
    %v87 = vrot.slane %v86, 4
    %v88 = vadd.f32 %v86, %v87
    %v89 = vrot.slane %v88, 2
    %v90 = vadd.f32 %v88, %v89
    %v91 = vrot.slane %v90, 1
    %v92 = vadd.f32 %v90, %v91
    %v93 = vlog2.pop %v73
    %v94 = vmul.f32 %v93, 0.6931472
    %v95 = vadd.f32 %v63, %v94
    %v96 = vmul.f32 %v95, %v84
    %v97 = vsub.f32 %v96, %v92
    %v98 = vsel %vm56, %v77, 0.0
    %v99 = vrot.slane %v98, 4
    %v100 = vadd.f32 %v98, %v99
    %v101 = vrot.slane %v100, 2
    %v102 = vadd.f32 %v100, %v101
    %v103 = vrot.slane %v102, 1
    %v104 = vadd.f32 %v102, %v103
    %v105 = vmax.f32 %v104, 1e-08
    %v106 = vmin.f32 %v105, 1.0
    %v107 = vsub.f32 1.0, %v106
    %v108 = vmul.f32 %v107, %v107
    %v109 = vlog2.pop %v106
    %v110 = vmul.f32 %v109, 0.6931472
    %v111 = vsub.f32 0.0, %v110
    %v112 = vmul.f32 %v108, %v111
    %v113 = vld [vmem:[%s2] sm:$0x7f]
    %115 = vset.pattern.permute.xlu0 0
    %116 = vperm.xlu0 %115, %v113
    %v117 = vpop.permute.xlu0 %116
    %v119 = vmul.f32 %v117, %v55
    %v120 = vsel %vm56, %v119, 0.0
    %v121 = vrot.slane %v120, 4
    %v122 = vadd.f32 %v120, %v121
    %v123 = vrot.slane %v122, 2
    %v124 = vadd.f32 %v122, %v123
    %v125 = vrot.slane %v124, 1
    %v126 = vadd.f32 %v124, %v125
    %v127 = vmul.f32 %v126, %v112
    %vm128 = vcmask 1040384
    %v129 = vsel %vm128, %v97, %v127
    %v130 = vld [vmem:[#allocation5] sm:$0x3]
    %v131 = vadd.f32 %v130, %v129
    %132 = vst [vmem:[#allocation5] sm:$0x3] %v131
    %s133 = sadd.s32 0, 0
    %s134 = smul.u32 %s133, 128
    %v135 = vlaneseq
    %v136 = vand.u32 %v135, 127
    %v137 = vstv %s134
    %v138 = vadd.s32 %v137, %v136
    %vm139 = vcmp.lt.s32.totalorder %v138, 20
    %v140 = vsel %vm139, 1, 0
    %v141 = vcvt.s32.f32 %v140
    %v142 = vmul.f32 %v76, %v141
    %v143 = vld [vmem:[#allocation5 + $0x2] sm:$0x7f]
    %v144 = vadd.f32 %v143, %v77
    %145 = vst [vmem:[#allocation5 + $0x2] sm:$0x7f] %v144
    %v146 = vld [vmem:[#allocation5 + $0x9] sm:$0x7f]
    %v147 = vadd.f32 %v142, %v55
    %v148 = vadd.f32 %v146, %v147
    %149 = vst [vmem:[#allocation5 + $0x9] sm:$0x7f] %v148
    // Predicated region
    $region22: #{tpu_custom_call.1} parent=1 // pred_check
      _
    $region23: #{tpu_custom_call.1} parent=1 // pred_check_branch
      %151 = sbr.rel (0) target = $region25
    $region24: #{tpu_custom_call.1} parent=1 // pred_region
      %s153 = ssub.s32 256, 256
      %154 = vsyncadd [#allocation4], %s153
      %s155 = sshll.u32 [#allocation5], 4
      %s156 = int_to_ptr.vmem [resolvable:$true] %s155
      %161 = dma.vmem_to_hbm [thread:$0]  %s156, 256, %s3, [#allocation4], 128, 128, 8
    $region25: #{tpu_custom_call.1} parent=1 // pred_fallthru
      _
    // Predicated region
    $region26: #{tpu_custom_call.1} parent=1 // pred_check
      _
    $region27: #{tpu_custom_call.1} parent=1 // pred_check_branch
      %163 = sbr.rel (0) target = $region29
    $region28: #{tpu_custom_call.1} parent=1 // pred_region
      %164 = dma.done [#allocation4], 256
    $region29: #{tpu_custom_call.1} parent=1 // pred_fallthru
      _
    %165 = vsyncpa [#allocation3], 1
    %166 = vsyncpa [#allocation4], 1

</llo_original>
